<compile_context>
chip_gen: v7x
topology: tpu7x:2x2x1
jax: 0.10.0
libtpu: 0.0.40
codegen_flags: <defaults>
</compile_context>

<pallas_src>
import math
import numpy as np
import jax
import jax.numpy as jnp
from jax.experimental import pallas as pl
from jax.experimental.pallas import tpu as pltpu


def _make_kernel(emb_layers, t_total, tile_t, c_half, compute_dtype):
    needs_mask = (t_total % tile_t) != 0

    def kernel(x_ref, *rest):
        layer_refs = rest[:2 * emb_layers]
        head_w_ref = rest[2 * emb_layers]
        head_b_ref = rest[2 * emb_layers + 1]
        o_ref = rest[2 * emb_layers + 2]
        acc_num = rest[2 * emb_layers + 3]
        acc_den = rest[2 * emb_layers + 4]

        t_idx = pl.program_id(1)
        last = pl.num_programs(1) - 1

        @pl.when(t_idx == 0)
        def _init():
            acc_num[...] = jnp.zeros_like(acc_num)
            acc_den[...] = jnp.zeros_like(acc_den)

        x = x_ref[...]                                    # (F, tile_t), stream dtype (f32/bf16)
        x_f32 = x.astype(jnp.float32)

        # Layer 0: BN0 + BN1 folded into (w, b); weight kept f32 (tiny) for bf16-path accuracy.
        w0 = layer_refs[0][...]                           # (H, F) f32
        b0 = layer_refs[1][...]                           # (H, 1) f32
        out = jnp.dot(w0, x_f32, preferred_element_type=jnp.float32) + b0
        out = jnp.maximum(out, 0.0)

        # Remaining embedding layers with their BN folded; dropout = identity (eval).
        for i in range(1, emb_layers):
            w = layer_refs[2 * i][...]                    # (H, H) compute_dtype
            b = layer_refs[2 * i + 1][...]                # (H, 1) f32
            out = jnp.dot(w, out.astype(compute_dtype),
                          preferred_element_type=jnp.float32) + b
            out = jnp.maximum(out, 0.0)

        # Residual add with the pre-BN0 input (module requires hidden_units == freq_bins).
        out = out + x_f32                                 # (H, tile_t) f32

        # Fused attention head: rows [0,C) = att, rows [c_half, c_half+C) = cla.
        head = jnp.dot(head_w_ref[...], out.astype(compute_dtype),
                       preferred_element_type=jnp.float32) + head_b_ref[...]
        head = jax.nn.sigmoid(head)                       # (2*c_half, tile_t)

        eps = 1e-07
        att = jnp.clip(head[:c_half], eps, 1.0 - eps)     # sublane-aligned slices (c_half % 8 == 0)
        cla = head[c_half:]
        num = att * cla

        if needs_mask:
            is_last = t_idx == last

            @pl.when(jnp.logical_not(is_last))
            def _acc_full():
                acc_num[...] += jnp.sum(num, axis=1, keepdims=True)
                acc_den[...] += jnp.sum(att, axis=1, keepdims=True)

            @pl.when(is_last)
            def _acc_masked():
                # Final ragged chunk: lanes >= t_total read unspecified (OOB) data; a select
                # (not a multiply) zeroes both the numerator and denominator contributions so
                # garbage / NaN cannot leak into the accumulators.
                lane = jax.lax.broadcasted_iota(jnp.int32, (1, tile_t), 1)
                valid = (t_idx * tile_t + lane) < t_total
                acc_num[...] += jnp.sum(jnp.where(valid, num, 0.0), axis=1, keepdims=True)
                acc_den[...] += jnp.sum(jnp.where(valid, att, 0.0), axis=1, keepdims=True)
        else:
            acc_num[...] += jnp.sum(num, axis=1, keepdims=True)
            acc_den[...] += jnp.sum(att, axis=1, keepdims=True)

        @pl.when(t_idx == last)
        def _finalize():
            # pred = sum_T(att*cla) / sum_T(att) == sum_T((att / sum_T(att)) * cla)
            pred = acc_num[...] / acc_den[...]
            o_ref[...] = jnp.clip(pred, 0.0, 1.0)         # hardtanh(0, 1)

    return kernel


def build_params(key, freq_bins, hidden_units, num_classes, emb_layers):
    """Deterministic re-implementation of init_layer / init_bn (PyTorch weight orientation)."""
    bn_eps = 1e-5

    def bn_affine(c):
        gamma = jnp.ones((c,), jnp.float32)    # init_bn: weight = 1
        beta = jnp.zeros((c,), jnp.float32)    # default bias = 0
        mean = jnp.zeros((c,), jnp.float32)    # running_mean = 0
        var = jnp.ones((c,), jnp.float32)      # running_var = 1
        scale = gamma / jnp.sqrt(var + bn_eps)
        shift = beta - mean * scale
        return scale, shift

    ks = jax.random.split(key, emb_layers + 2)
    params = {"bn0": bn_affine(freq_bins), "layers": []}

    for i in range(emb_layers):
        n_in = freq_bins if i == 0 else hidden_units
        lim = math.sqrt(2.0 / n_in) * math.sqrt(3.0)
        w = jax.random.uniform(ks[i], (hidden_units, n_in), jnp.float32, -lim, lim)  # (out, in)
        scale, shift = bn_affine(hidden_units)
        params["layers"].append((w, scale, shift))

    lim = math.sqrt(2.0 / hidden_units) * math.sqrt(3.0)
    att_w = jax.random.uniform(ks[emb_layers], (num_classes, hidden_units), jnp.float32, -lim, lim)
    cla_w = jax.random.uniform(ks[emb_layers + 1], (num_classes, hidden_units), jnp.float32, -lim, lim)
    params["att"] = (att_w, jnp.zeros((num_classes,), jnp.float32),
                     cla_w, jnp.zeros((num_classes,), jnp.float32))
    return params


def _prepare_kernel_params(params, c_half, compute_dtype):
    """Fold BN0 + per-layer BN into conv weights/biases; fuse att/cla heads on sublanes."""
    bn0_s, bn0_b = params["bn0"]                   # (F,)
    layers = params["layers"]                      # [(W (H, F_in), scale (H,), shift (H,)), ...]
    assert len(layers) >= 1, "BN0 folding requires at least one embedding layer"

    args = []
    # Layer 0: y = s1 * (W0 @ (bn0_s*x + bn0_b)) + t1  ->  (s1 ⊙ W0 ⊙ bn0_s) @ x + bias.
    W0, s1, t1 = layers[0]
    Wf = (s1[:, None] * W0) * bn0_s[None, :]
    bf = s1 * (W0 @ bn0_b) + t1
    args += [Wf.astype(jnp.float32), bf.reshape(-1, 1).astype(jnp.float32)]  # keep f32 (tiny)
    for (W, s, t) in layers[1:]:
        args += [(s[:, None] * W).astype(compute_dtype),
                 t.reshape(-1, 1).astype(jnp.float32)]

    att_w, att_b, cla_w, cla_b = params["att"]     # (C, H), (C,)
    C, H = att_w.shape
    head_w = jnp.zeros((2 * c_half, H), jnp.float32)
    head_w = head_w.at[:C].set(att_w).at[c_half:c_half + C].set(cla_w)
    head_b = jnp.zeros((2 * c_half, 1), jnp.float32)
    head_b = head_b.at[:C, 0].set(att_b).at[c_half:c_half + C, 0].set(cla_b)
    # Padded class rows carry sigmoid(0)=0.5 junk through the accumulators; the wrapper slices
    # [:, :C] so they never reach the result (keep that slice consistent with this packing).
    args += [head_w.astype(compute_dtype), head_b.astype(jnp.float32)]
    return args


def forward(spec_bft, params, emb_layers, *, tile_t=512, compute_dtype=jnp.float32):
    """spec_bft: (B, freq_bins, time_steps) — MelSpectrogram layout, streamed as-is (f32 or bf16).

    compute_dtype=bfloat16 is valid on v5e/v6e/v7x (bf16 MXU operands, f32 accumulation).
    Passing a bf16 spec halves the only per-chunk HBM stream; ideally that cast is fused into the
    upstream spectrogram producer rather than done as a standalone copy.
    """
    B, F, T = spec_bft.shape
    H = params["layers"][0][0].shape[0]
    assert H == F, "residual add in EmbeddingLayers requires hidden_units == freq_bins"
    C = params["att"][0].shape[0]
    c_half = max(8, -(-C // 8) * 8)                # per-head sublane pad (att/cla split point)

    # Time tile on lanes: multiple of 128, or the full T when it already fits one chunk.
    tile_t = int(tile_t)
    if T <= tile_t:
        tile_t = T
    else:
        tile_t = max(128, (tile_t // 128) * 128)
    num_chunks = pl.cdiv(T, tile_t)

    kernel_args = _prepare_kernel_params(params, c_half, compute_dtype)

    def const_spec(a):
        # Weights/biases stay VMEM-resident (constant index map). At production hidden_units on
        # v7x (64 MiB VMEM) consider pipeline_mode=pl.Buffered(1) + an explicit vmem_limit_bytes
        # to avoid double-buffering them; irrelevant at these sizes.
        nd = a.ndim
        return pl.BlockSpec(a.shape, lambda b, t, _nd=nd: (0,) * _nd)

    in_specs = [pl.BlockSpec((None, F, tile_t), lambda b, t: (b, 0, t))]
    in_specs += [const_spec(a) for a in kernel_args]

    out = pl.pallas_call(
        _make_kernel(emb_layers, T, tile_t, c_half, compute_dtype),
        out_shape=jax.ShapeDtypeStruct((B, c_half, 1), jnp.float32),
        grid=(B, num_chunks),
        in_specs=in_specs,
        out_specs=pl.BlockSpec((None, c_half, 1), lambda b, t: (b, 0, 0)),
        scratch_shapes=[pltpu.VMEM((c_half, 1), jnp.float32),
                        pltpu.VMEM((c_half, 1), jnp.float32)],
        compiler_params=pltpu.CompilerParams(
            dimension_semantics=("parallel", "arbitrary")),
    )(spec_bft, *kernel_args)

    pred = out[:, :C, 0]                           # drop padded class rows -> (B, C)
    return {"pred": pred, "spec": spec_bft}


def reference(spec_bft, params):
    """Pure-JAX reference of the same forward pass (unfolded BN, separate att/cla heads)."""
    x = jnp.transpose(spec_bft.astype(jnp.float32), (0, 2, 1))   # (B, T, F)
    bn0_s, bn0_b = params["bn0"]
    out = x * bn0_s[None, None, :] + bn0_b[None, None, :]
    for (W, s, t) in params["layers"]:
        out = jnp.maximum((out @ W.T) * s[None, None, :] + t[None, None, :], 0.0)
    out = out + x
    att_w, att_b, cla_w, cla_b = params["att"]
    att = jax.nn.sigmoid(out @ att_w.T + att_b[None, None, :])
    cla = jax.nn.sigmoid(out @ cla_w.T + cla_b[None, None, :])
    eps = 1e-07
    att = jnp.clip(att, eps, 1.0 - eps)
    norm_att = att / jnp.sum(att, axis=1, keepdims=True)
    pred = jnp.sum(norm_att * cla, axis=1)
    return jnp.clip(pred, 0.0, 1.0)


if __name__ == "__main__":
    B = 2
    freq_bins = 32
    time_steps = 300            # not a multiple of the 128-lane time tile -> exercises the ragged mask
    hidden_units = 32           # must equal freq_bins for the residual add in EmbeddingLayers
    classes_num = 11            # module uses classes_num - 1 = 10 output classes
    emb_layers = 2

    key = jax.random.PRNGKey(0)
    k_spec, k_param = jax.random.split(key)

    spec = jax.random.uniform(k_spec, (B, freq_bins, time_steps), jnp.float32)
    params = build_params(k_param, freq_bins, hidden_units, classes_num - 1, emb_layers)

    ref = reference(spec, params)

    # f32 path, multi-chunk time grid (3 chunks, ragged final chunk -> masked accumulate path).
    out = forward(spec, params, emb_layers, tile_t=128, compute_dtype=jnp.float32)
    pred = jax.block_until_ready(out["pred"])
    np.testing.assert_allclose(np.asarray(pred), np.asarray(ref), rtol=1e-5, atol=1e-5)
    assert pred.shape == (B, classes_num - 1)

    # f32 path, single full-extent time chunk (no masking).
    out_single = forward(spec, params, emb_layers, tile_t=512, compute_dtype=jnp.float32)
    pred_single = jax.block_until_ready(out_single["pred"])
    np.testing.assert_allclose(np.asarray(pred_single), np.asarray(ref), rtol=1e-5, atol=1e-5)

    # bf16 streamed spec + bf16 matmul operands (valid on v5e/v6e/v7x), f32 accumulation.
    out_bf16 = forward(spec.astype(jnp.bfloat16), params, emb_layers,
                       tile_t=128, compute_dtype=jnp.bfloat16)
    pred_bf16 = jax.block_until_ready(out_bf16["pred"])
    np.testing.assert_allclose(np.asarray(pred_bf16), np.asarray(ref), rtol=0.0, atol=3e-2)

    print("KERNEL_OK")
</pallas_src>

<mosaic_0001>
module attributes {stable_mosaic.version = 11 : i64} {
  func.func @kernel(%arg0: i32, %arg1: i32, %arg2: memref<1x32x128xf32, #tpu.memory_space<vmem>>, %arg3: memref<32x32xf32, #tpu.memory_space<vmem>>, %arg4: memref<32x1xf32, #tpu.memory_space<vmem>>, %arg5: memref<32x32xf32, #tpu.memory_space<vmem>>, %arg6: memref<32x1xf32, #tpu.memory_space<vmem>>, %arg7: memref<32x32xf32, #tpu.memory_space<vmem>>, %arg8: memref<32x1xf32, #tpu.memory_space<vmem>>, %arg9: memref<1x16x1xf32, #tpu.memory_space<vmem>>, %arg10: memref<16x1xf32, #tpu.memory_space<vmem>>, %arg11: memref<16x1xf32, #tpu.memory_space<vmem>>) attributes {dimension_semantics = [#tpu.dimension_semantics<parallel>, #tpu.dimension_semantics<arbitrary>], iteration_bounds = array<i64: 2, 3>, scalar_prefetch = 0 : i64, scratch_operands = 2 : i64, tpu.core_type = #tpu.core_type<tc>, window_params = [{transform_indices = @transform_0, window_bounds = array<i64: 1, 32, 128>}, {pipeline_mode = #tpu.pipeline_mode<synchronous>, transform_indices = @transform_1, window_bounds = array<i64: 32, 32>}, {pipeline_mode = #tpu.pipeline_mode<synchronous>, transform_indices = @transform_2, window_bounds = array<i64: 32, 1>}, {pipeline_mode = #tpu.pipeline_mode<synchronous>, transform_indices = @transform_3, window_bounds = array<i64: 32, 32>}, {pipeline_mode = #tpu.pipeline_mode<synchronous>, transform_indices = @transform_4, window_bounds = array<i64: 32, 1>}, {pipeline_mode = #tpu.pipeline_mode<synchronous>, transform_indices = @transform_5, window_bounds = array<i64: 32, 32>}, {pipeline_mode = #tpu.pipeline_mode<synchronous>, transform_indices = @transform_6, window_bounds = array<i64: 32, 1>}, {transform_indices = @transform_7, window_bounds = array<i64: 1, 16, 1>}]} {
    %c0_i32 = arith.constant 0 : i32
    %0 = arith.cmpi eq, %arg1, %c0_i32 : i32
    %1 = arith.extui %0 : i1 to i32
    %c0_i32_0 = arith.constant 0 : i32
    %2 = arith.cmpi ne, %1, %c0_i32_0 : i32
    scf.if %2 {
      %cst_26 = arith.constant 0.000000e+00 : f32
      %46 = vector.broadcast %cst_26 : f32 to vector<16x1xf32>
      %c0_27 = arith.constant 0 : index
      %c0_28 = arith.constant 0 : index
      %47 = vector.load %arg10[%c0_27, %c0_28] : memref<16x1xf32, #tpu.memory_space<vmem>>, vector<16x1xf32>
      tpu.vector_store %arg10[%c0_27, %c0_28], %46 {strides = array<i32>} : memref<16x1xf32, #tpu.memory_space<vmem>>, vector<16x1xf32>,
      %cst_29 = arith.constant 0.000000e+00 : f32
      %48 = vector.broadcast %cst_29 : f32 to vector<16x1xf32>
      %c0_30 = arith.constant 0 : index
      %c0_31 = arith.constant 0 : index
      %49 = vector.load %arg11[%c0_30, %c0_31] : memref<16x1xf32, #tpu.memory_space<vmem>>, vector<16x1xf32>
      tpu.vector_store %arg11[%c0_30, %c0_31], %48 {strides = array<i32>} : memref<16x1xf32, #tpu.memory_space<vmem>>, vector<16x1xf32>,
    } else {
    }
    %c0 = arith.constant 0 : index
    %c0_1 = arith.constant 0 : index
    %c0_2 = arith.constant 0 : index
    %3 = vector.load %arg2[%c0, %c0_1, %c0_2] : memref<1x32x128xf32, #tpu.memory_space<vmem>>, vector<1x32x128xf32>
    %4 = vector.shape_cast %3 : vector<1x32x128xf32> to vector<32x128xf32>
    %c0_3 = arith.constant 0 : index
    %c0_4 = arith.constant 0 : index
    %5 = vector.load %arg3[%c0_3, %c0_4] : memref<32x32xf32, #tpu.memory_space<vmem>>, vector<32x32xf32>
    %c0_5 = arith.constant 0 : index
    %c0_6 = arith.constant 0 : index
    %6 = vector.load %arg4[%c0_5, %c0_6] : memref<32x1xf32, #tpu.memory_space<vmem>>, vector<32x1xf32>
    %cst = arith.constant dense<0.000000e+00> : vector<32x128xf32>
    %7 = tpu.matmul %5, %4, %cst {dimension_numbers = #tpu.dot_dimension_numbers<[1], [0], [0], [1], [0, 0, 1, 1], [], []>} : vector<32x32xf32>, vector<32x128xf32>, vector<32x128xf32> -> vector<32x128xf32>
    %8 = vector.broadcast %6 : vector<32x1xf32> to vector<32x128xf32>
    %9 = arith.addf %7, %8 : vector<32x128xf32>
    %cst_7 = arith.constant 0.000000e+00 : f32
    %10 = vector.broadcast %cst_7 : f32 to vector<32x128xf32>
    %11 = arith.maximumf %9, %10 : vector<32x128xf32>
    %c0_8 = arith.constant 0 : index
    %c0_9 = arith.constant 0 : index
    %12 = vector.load %arg5[%c0_8, %c0_9] : memref<32x32xf32, #tpu.memory_space<vmem>>, vector<32x32xf32>
    %c0_10 = arith.constant 0 : index
    %c0_11 = arith.constant 0 : index
    %13 = vector.load %arg6[%c0_10, %c0_11] : memref<32x1xf32, #tpu.memory_space<vmem>>, vector<32x1xf32>
    %cst_12 = arith.constant dense<0.000000e+00> : vector<32x128xf32>
    %14 = tpu.matmul %12, %11, %cst_12 {dimension_numbers = #tpu.dot_dimension_numbers<[1], [0], [0], [1], [0, 0, 1, 1], [], []>} : vector<32x32xf32>, vector<32x128xf32>, vector<32x128xf32> -> vector<32x128xf32>
    %15 = vector.broadcast %13 : vector<32x1xf32> to vector<32x128xf32>
    %16 = arith.addf %14, %15 : vector<32x128xf32>
    %cst_13 = arith.constant 0.000000e+00 : f32
    %17 = vector.broadcast %cst_13 : f32 to vector<32x128xf32>
    %18 = arith.maximumf %16, %17 : vector<32x128xf32>
    %19 = arith.addf %18, %4 : vector<32x128xf32>
    %c0_14 = arith.constant 0 : index
    %c0_15 = arith.constant 0 : index
    %20 = vector.load %arg7[%c0_14, %c0_15] : memref<32x32xf32, #tpu.memory_space<vmem>>, vector<32x32xf32>
    %cst_16 = arith.constant dense<0.000000e+00> : vector<32x128xf32>
    %21 = tpu.matmul %20, %19, %cst_16 {dimension_numbers = #tpu.dot_dimension_numbers<[1], [0], [0], [1], [0, 0, 1, 1], [], []>} : vector<32x32xf32>, vector<32x128xf32>, vector<32x128xf32> -> vector<32x128xf32>
    %c0_17 = arith.constant 0 : index
    %c0_18 = arith.constant 0 : index
    %22 = vector.load %arg8[%c0_17, %c0_18] : memref<32x1xf32, #tpu.memory_space<vmem>>, vector<32x1xf32>
    %23 = vector.broadcast %22 : vector<32x1xf32> to vector<32x128xf32>
    %24 = arith.addf %21, %23 : vector<32x128xf32>
    %25 = arith.negf %24 : vector<32x128xf32>
    %26 = math.exp %25 : vector<32x128xf32>
    %cst_19 = arith.constant 1.000000e+00 : f32
    %27 = vector.broadcast %cst_19 : f32 to vector<32x128xf32>
    %28 = arith.addf %27, %26 : vector<32x128xf32>
    %29 = arith.divf %27, %28 : vector<32x128xf32>
    %30 = vector.extract_strided_slice %29 {offsets = [0, 0], sizes = [16, 128], strides = [1, 1]} : vector<32x128xf32> to vector<16x128xf32>
    %cst_20 = arith.constant 1.000000e-07 : f32
    %cst_21 = arith.constant 0.99999988 : f32
    %31 = vector.broadcast %cst_20 : f32 to vector<16x128xf32>
    %32 = arith.maximumf %31, %30 : vector<16x128xf32>
    %33 = vector.broadcast %cst_21 : f32 to vector<16x128xf32>
    %34 = arith.minimumf %33, %32 : vector<16x128xf32>
    %35 = vector.extract_strided_slice %29 {offsets = [16, 0], sizes = [16, 128], strides = [1, 1]} : vector<32x128xf32> to vector<16x128xf32>
    %36 = arith.mulf %34, %35 : vector<16x128xf32>
    %c2_i32 = arith.constant 2 : i32
    %37 = arith.cmpi eq, %arg1, %c2_i32 : i32
    %true = arith.constant true
    %38 = arith.xori %37, %true : i1
    %39 = arith.extui %38 : i1 to i32
    %c0_i32_22 = arith.constant 0 : i32
    %40 = arith.cmpi ne, %39, %c0_i32_22 : i32
    scf.if %40 {
      %c0_26 = arith.constant 0 : index
      %c0_27 = arith.constant 0 : index
      %46 = vector.load %arg10[%c0_26, %c0_27] : memref<16x1xf32, #tpu.memory_space<vmem>>, vector<16x1xf32>
      %cst_28 = arith.constant dense<0.000000e+00> : vector<16xf32>
      %47 = vector.multi_reduction <add>, %36, %cst_28 [1] : vector<16x128xf32> to vector<16xf32>
      %48 = vector.shape_cast %47 : vector<16xf32> to vector<16x1xf32>
      %49 = arith.addf %46, %48 : vector<16x1xf32>
      %c0_29 = arith.constant 0 : index
      %c0_30 = arith.constant 0 : index
      %50 = vector.load %arg10[%c0_29, %c0_30] : memref<16x1xf32, #tpu.memory_space<vmem>>, vector<16x1xf32>
      tpu.vector_store %arg10[%c0_29, %c0_30], %49 {strides = array<i32>} : memref<16x1xf32, #tpu.memory_space<vmem>>, vector<16x1xf32>,
      %c0_31 = arith.constant 0 : index
      %c0_32 = arith.constant 0 : index
      %51 = vector.load %arg11[%c0_31, %c0_32] : memref<16x1xf32, #tpu.memory_space<vmem>>, vector<16x1xf32>
      %cst_33 = arith.constant dense<0.000000e+00> : vector<16xf32>
      %52 = vector.multi_reduction <add>, %34, %cst_33 [1] : vector<16x128xf32> to vector<16xf32>
      %53 = vector.shape_cast %52 : vector<16xf32> to vector<16x1xf32>
      %54 = arith.addf %51, %53 : vector<16x1xf32>
      %c0_34 = arith.constant 0 : index
      %c0_35 = arith.constant 0 : index
      %55 = vector.load %arg11[%c0_34, %c0_35] : memref<16x1xf32, #tpu.memory_space<vmem>>, vector<16x1xf32>
      tpu.vector_store %arg11[%c0_34, %c0_35], %54 {strides = array<i32>} : memref<16x1xf32, #tpu.memory_space<vmem>>, vector<16x1xf32>,
    } else {
    }
    %41 = arith.extui %37 : i1 to i32
    %c0_i32_23 = arith.constant 0 : i32
    %42 = arith.cmpi ne, %41, %c0_i32_23 : i32
    scf.if %42 {
      %46 = tpu.iota {dimensions = array<i32: 1>} : vector<1x128xi32>
      %c128_i32 = arith.constant 128 : i32
      %47 = arith.muli %arg1, %c128_i32 : i32
      %48 = vector.broadcast %47 : i32 to vector<1x128xi32>
      %49 = arith.addi %48, %46 : vector<1x128xi32>
      %c300_i32 = arith.constant 300 : i32
      %50 = vector.broadcast %c300_i32 : i32 to vector<1x128xi32>
      %51 = arith.cmpi slt, %49, %50 : vector<1x128xi32>
      %c0_26 = arith.constant 0 : index
      %c0_27 = arith.constant 0 : index
      %52 = vector.load %arg10[%c0_26, %c0_27] : memref<16x1xf32, #tpu.memory_space<vmem>>, vector<16x1xf32>
      %cst_28 = arith.constant 0.000000e+00 : f32
      %53 = vector.shape_cast %51 : vector<1x128xi1> to vector<1x128xi1>
      %54 = vector.broadcast %53 : vector<1x128xi1> to vector<16x128xi1>
      %55 = vector.broadcast %cst_28 : f32 to vector<16x128xf32>
      %56 = arith.select %54, %36, %55 : vector<16x128xi1>, vector<16x128xf32>
      %cst_29 = arith.constant dense<0.000000e+00> : vector<16xf32>
      %57 = vector.multi_reduction <add>, %56, %cst_29 [1] : vector<16x128xf32> to vector<16xf32>
      %58 = vector.shape_cast %57 : vector<16xf32> to vector<16x1xf32>
      %59 = arith.addf %52, %58 : vector<16x1xf32>
      %c0_30 = arith.constant 0 : index
      %c0_31 = arith.constant 0 : index
      %60 = vector.load %arg10[%c0_30, %c0_31] : memref<16x1xf32, #tpu.memory_space<vmem>>, vector<16x1xf32>
      tpu.vector_store %arg10[%c0_30, %c0_31], %59 {strides = array<i32>} : memref<16x1xf32, #tpu.memory_space<vmem>>, vector<16x1xf32>,
      %c0_32 = arith.constant 0 : index
      %c0_33 = arith.constant 0 : index
      %61 = vector.load %arg11[%c0_32, %c0_33] : memref<16x1xf32, #tpu.memory_space<vmem>>, vector<16x1xf32>
      %cst_34 = arith.constant 0.000000e+00 : f32
      %62 = vector.shape_cast %51 : vector<1x128xi1> to vector<1x128xi1>
      %63 = vector.broadcast %62 : vector<1x128xi1> to vector<16x128xi1>
      %64 = vector.broadcast %cst_34 : f32 to vector<16x128xf32>
      %65 = arith.select %63, %34, %64 : vector<16x128xi1>, vector<16x128xf32>
      %cst_35 = arith.constant dense<0.000000e+00> : vector<16xf32>
      %66 = vector.multi_reduction <add>, %65, %cst_35 [1] : vector<16x128xf32> to vector<16xf32>
      %67 = vector.shape_cast %66 : vector<16xf32> to vector<16x1xf32>
      %68 = arith.addf %61, %67 : vector<16x1xf32>
      %c0_36 = arith.constant 0 : index
      %c0_37 = arith.constant 0 : index
      %69 = vector.load %arg11[%c0_36, %c0_37] : memref<16x1xf32, #tpu.memory_space<vmem>>, vector<16x1xf32>
      tpu.vector_store %arg11[%c0_36, %c0_37], %68 {strides = array<i32>} : memref<16x1xf32, #tpu.memory_space<vmem>>, vector<16x1xf32>,
    } else {
    }
    %c2_i32_24 = arith.constant 2 : i32
    %43 = arith.cmpi eq, %arg1, %c2_i32_24 : i32
    %44 = arith.extui %43 : i1 to i32
    %c0_i32_25 = arith.constant 0 : i32
    %45 = arith.cmpi ne, %44, %c0_i32_25 : i32
    scf.if %45 {
      %c0_26 = arith.constant 0 : index
      %c0_27 = arith.constant 0 : index
      %46 = vector.load %arg10[%c0_26, %c0_27] : memref<16x1xf32, #tpu.memory_space<vmem>>, vector<16x1xf32>
      %c0_28 = arith.constant 0 : index
      %c0_29 = arith.constant 0 : index
      %47 = vector.load %arg11[%c0_28, %c0_29] : memref<16x1xf32, #tpu.memory_space<vmem>>, vector<16x1xf32>
      %48 = arith.divf %46, %47 : vector<16x1xf32>
      %cst_30 = arith.constant 0.000000e+00 : f32
      %cst_31 = arith.constant 1.000000e+00 : f32
      %49 = vector.broadcast %cst_30 : f32 to vector<16x1xf32>
      %50 = arith.maximumf %49, %48 : vector<16x1xf32>
      %51 = vector.broadcast %cst_31 : f32 to vector<16x1xf32>
      %52 = arith.minimumf %51, %50 : vector<16x1xf32>
      %c0_32 = arith.constant 0 : index
      %c0_33 = arith.constant 0 : index
      %c0_34 = arith.constant 0 : index
      %53 = vector.load %arg9[%c0_32, %c0_33, %c0_34] : memref<1x16x1xf32, #tpu.memory_space<vmem>>, vector<1x16x1xf32>
      %54 = vector.shape_cast %53 : vector<1x16x1xf32> to vector<16x1xf32>
      %55 = vector.shape_cast %52 : vector<16x1xf32> to vector<1x16x1xf32>
      tpu.vector_store %arg9[%c0_32, %c0_33, %c0_34], %55 {strides = array<i32>} : memref<1x16x1xf32, #tpu.memory_space<vmem>>, vector<1x16x1xf32>,
    } else {
    }
    return
  }
  func.func @transform_0(%arg0: i32, %arg1: i32) -> (i32, i32, i32) {
    %c0_i32 = arith.constant 0 : i32
    %c0_i32_0 = arith.constant 0 : i32
    return %arg0, %c0_i32, %arg1 : i32, i32, i32
  }
  func.func @transform_1(%arg0: i32, %arg1: i32) -> (i32, i32) {
    %c0_i32 = arith.constant 0 : i32
    %c0_i32_0 = arith.constant 0 : i32
    %c0_i32_1 = arith.constant 0 : i32
    return %c0_i32, %c0_i32_0 : i32, i32
  }
  func.func @transform_2(%arg0: i32, %arg1: i32) -> (i32, i32) {
    %c0_i32 = arith.constant 0 : i32
    %c0_i32_0 = arith.constant 0 : i32
    %c0_i32_1 = arith.constant 0 : i32
    return %c0_i32, %c0_i32_0 : i32, i32
  }
  func.func @transform_3(%arg0: i32, %arg1: i32) -> (i32, i32) {
    %c0_i32 = arith.constant 0 : i32
    %c0_i32_0 = arith.constant 0 : i32
    %c0_i32_1 = arith.constant 0 : i32
    return %c0_i32, %c0_i32_0 : i32, i32
  }
  func.func @transform_4(%arg0: i32, %arg1: i32) -> (i32, i32) {
    %c0_i32 = arith.constant 0 : i32
    %c0_i32_0 = arith.constant 0 : i32
    %c0_i32_1 = arith.constant 0 : i32
    return %c0_i32, %c0_i32_0 : i32, i32
  }
  func.func @transform_5(%arg0: i32, %arg1: i32) -> (i32, i32) {
    %c0_i32 = arith.constant 0 : i32
    %c0_i32_0 = arith.constant 0 : i32
    %c0_i32_1 = arith.constant 0 : i32
    return %c0_i32, %c0_i32_0 : i32, i32
  }
  func.func @transform_6(%arg0: i32, %arg1: i32) -> (i32, i32) {
    %c0_i32 = arith.constant 0 : i32
    %c0_i32_0 = arith.constant 0 : i32
    %c0_i32_1 = arith.constant 0 : i32
    return %c0_i32, %c0_i32_0 : i32, i32
  }
  func.func @transform_7(%arg0: i32, %arg1: i32) -> (i32, i32, i32) {
    %c0_i32 = arith.constant 0 : i32
    %c0_i32_0 = arith.constant 0 : i32
    %c0_i32_1 = arith.constant 0 : i32
    return %arg0, %c0_i32, %c0_i32_0 : i32, i32, i32
  }
}

</mosaic_0001>

<llo_original>
// kernel: tpu_custom_call.1
$region0: #{tpu_custom_call.1}
  #allocation0 [shape = 'u32[]', space=smem, size = 0x4, offset = 0x4, fixed_abs, tag = 'smem constant byte address 0x4 - core index']
  #allocation1 [shape = 'u32[144,128]{1,0:T(1,128)}', space=vmem, size = 0x12000, scoped, tag = 'internal scratch']
  #allocation2 [shape = 'f32[16,1]{1,0:T(8,128)}', space=vmem, size = 0x2000, scoped, tag = 'scratch operand']
  #allocation3 [shape = 'f32[16,1]{1,0:T(8,128)}', space=vmem, size = 0x2000, scoped, tag = 'scratch operand']
  %s0 = inlined_call_operand.hbm [shape: f32[2,32,300], index: 0, kind: input, shape index: {}]
  %s1 = inlined_call_operand.vmem [shape: f32[32,32], index: 1, kind: input, shape index: {}]
  %s2 = inlined_call_operand.vmem [shape: f32[32,1], index: 2, kind: input, shape index: {}]
  %s3 = inlined_call_operand.vmem [shape: f32[32,32], index: 3, kind: input, shape index: {}]
  %s4 = inlined_call_operand.vmem [shape: f32[32,1], index: 4, kind: input, shape index: {}]
  %s5 = inlined_call_operand.vmem [shape: f32[32,32], index: 5, kind: input, shape index: {}]
  %s6 = inlined_call_operand.vmem [shape: f32[32,1], index: 6, kind: input, shape index: {}]
  %s7 = inlined_call_operand.vmem [shape: f32[2,16,1], index: 7, kind: output, shape index: {}]
  %s8 = sld [smem:[#allocation0]]
  $region77: #{tpu_custom_call.1} parent=0
    _
  %s10 = ssub.s32 1, %s8
  %s11 = scalar_select 0, %s10, %s8
  $region1: #{tpu_custom_call.1} parent=0
    #allocation4 [shape = 'u8[32768]{0}', space=vmem, size = 0x8000, scoped, tag = 'input window, operand 0']
    #allocation5 [shape = 's32[2]{0}', space=sflag, size = 0x8, scoped, tag = 'scoped memory for tpu_custom_call.1']
    %12 = vsyncpa [#allocation5], 0
    %s13 = scalar_lea.sflag [#allocation5], 1
    %14 = vsyncpa %s13, 0
    loop: start=0, step=1, limit=8
    $region2: #{tpu_custom_call.1} parent=1 // loop_pre_header
      _
    $region3: #{tpu_custom_call.1} parent=1 // loop_header
      %s16 = sphi 0, %s20
      %p17 = scmp.ge.s32.totalorder %s16, 8
      %s23 = sphi 0, %s35
      %s24 = sphi 0, %s31
      %s25 = sphi 0, %s23
      %s26 = sphi 0, %s24
      %s27 = sphi 0, %s25
      %s28 = sphi 0, %s26
      %s40 = sphi 0, %s42
      %s43 = sphi 0, %s40
      %s44 = sphi 0, %s43
      %s60 = sphi 0, %s44
      %s64 = sphi 0, %s64
      %s66 = sphi 0, %s64
      %s67 = sphi 0, %s66
      %s81 = sphi 0, %s67
      %s85 = sphi 0, %s85
      %s87 = sphi 0, %s85
      %s88 = sphi 0, %s87
      %s102 = sphi 0, %s88
      %s106 = sphi 0, %s106
      %s108 = sphi 0, %s106
      %s109 = sphi 0, %s108
      %s123 = sphi 0, %s109
      %s127 = sphi 0, %s127
      %s129 = sphi 0, %s127
      %s130 = sphi 0, %s129
      %s144 = sphi 0, %s130
      %s148 = sphi 0, %s148
      %s150 = sphi 0, %s148
      %s151 = sphi 0, %s150
      %s165 = sphi 0, %s151
      %s169 = sphi 0, %s169
      %s171 = sphi 0, %s169
      %s172 = sphi 0, %s171
      %s186 = sphi 0, %s172
      %s192 = sphi 0, %s194
      %s195 = sphi 0, %s192
      %s196 = sphi 0, %s195
      %s212 = sphi 0, %s196
    $region4: #{tpu_custom_call.1} parent=1 // loop_header_branch
      %19 = sbr.rel (%p17) target = $region8
    $region5: #{tpu_custom_call.1} parent=1 // loop_body
      %s21 = ssub.s32 %s16, 1
      %s22 = ssub.s32 %s16, 2
      %s29 = sadd.s32 1, %s24
      %p30 = scmp.ge.s32.totalorder %s29, 3
      %s31 = scalar_select %p30, 0, %s29
      %s32 = sadd.s32 1, %s23
      %s33 = scalar_select %p30, %s32, %s23
      %p34 = scmp.ge.s32.totalorder %s33, 2
      %s35 = scalar_select %p34, 0, %s33
      %s36 = ssub.s32 %s23, %s35
      %s37 = ssub.s32 %s24, %s31
      %s38 = sor.u32 %s36, %s37
      %p39 = scmp.eq.s32.totalorder %s38, 0
      %s41 = sadd.s32 %s40, 1
      %s42 = scalar_select %p39, %s40, %s41
      %p45 = pneg %p39
      %p46 = scmp.eq.s32.totalorder %s16, 5
      %p47 = por %p45, %p46
      %p48 = scmp.ne.s32.totalorder %s40, %s43
      %p49 = scmp.eq.s32.totalorder %s16, 0
      %p50 = por %p48, %p49
      %p51 = scmp.ne.s32.totalorder %s40, %s43
      %p52 = scmp.eq.s32.totalorder %s21, 5
      %p53 = por %p51, %p52
      %p54 = scmp.ne.s32.totalorder %s43, %s44
      %p55 = scmp.eq.s32.totalorder %s21, 0
      %p56 = por %p54, %p55
      %p57 = scmp.ne.s32.totalorder %s43, %s44
      %p58 = scmp.eq.s32.totalorder %s22, 5
      %p59 = por %p57, %p58
      %p61 = scmp.ne.s32.totalorder %s44, %s60
      %p62 = scmp.eq.s32.totalorder %s22, 0
      %p63 = por %p61, %p62
      %s65 = sadd.s32 %s64, 1
      %p68 = scmp.eq.s32.totalorder %s16, 5
      %p69 = scmp.ne.s32.totalorder %s64, %s66
      %p70 = scmp.eq.s32.totalorder %s16, 0
      %p71 = por %p69, %p70
      %p72 = scmp.ne.s32.totalorder %s64, %s66
      %p73 = scmp.eq.s32.totalorder %s21, 5
      %p74 = por %p72, %p73
      %p75 = scmp.ne.s32.totalorder %s66, %s67
      %p76 = scmp.eq.s32.totalorder %s21, 0
      %p77 = por %p75, %p76
      %p78 = scmp.ne.s32.totalorder %s66, %s67
      %p79 = scmp.eq.s32.totalorder %s22, 5
      %p80 = por %p78, %p79
      %p82 = scmp.ne.s32.totalorder %s67, %s81
      %p83 = scmp.eq.s32.totalorder %s22, 0
      %p84 = por %p82, %p83
      %s86 = sadd.s32 %s85, 1
      %p89 = scmp.eq.s32.totalorder %s16, 5
      %p90 = scmp.ne.s32.totalorder %s85, %s87
      %p91 = scmp.eq.s32.totalorder %s16, 0
      %p92 = por %p90, %p91
      %p93 = scmp.ne.s32.totalorder %s85, %s87
      %p94 = scmp.eq.s32.totalorder %s21, 5
      %p95 = por %p93, %p94
      %p96 = scmp.ne.s32.totalorder %s87, %s88
      %p97 = scmp.eq.s32.totalorder %s21, 0
      %p98 = por %p96, %p97
      %p99 = scmp.ne.s32.totalorder %s87, %s88
      %p100 = scmp.eq.s32.totalorder %s22, 5
      %p101 = por %p99, %p100
      %p103 = scmp.ne.s32.totalorder %s88, %s102
      %p104 = scmp.eq.s32.totalorder %s22, 0
      %p105 = por %p103, %p104
      %s107 = sadd.s32 %s106, 1
      %p110 = scmp.eq.s32.totalorder %s16, 5
      %p111 = scmp.ne.s32.totalorder %s106, %s108
      %p112 = scmp.eq.s32.totalorder %s16, 0
      %p113 = por %p111, %p112
      %p114 = scmp.ne.s32.totalorder %s106, %s108
      %p115 = scmp.eq.s32.totalorder %s21, 5
      %p116 = por %p114, %p115
      %p117 = scmp.ne.s32.totalorder %s108, %s109
      %p118 = scmp.eq.s32.totalorder %s21, 0
      %p119 = por %p117, %p118
      %p120 = scmp.ne.s32.totalorder %s108, %s109
      %p121 = scmp.eq.s32.totalorder %s22, 5
      %p122 = por %p120, %p121
      %p124 = scmp.ne.s32.totalorder %s109, %s123
      %p125 = scmp.eq.s32.totalorder %s22, 0
      %p126 = por %p124, %p125
      %s128 = sadd.s32 %s127, 1
      %p131 = scmp.eq.s32.totalorder %s16, 5
      %p132 = scmp.ne.s32.totalorder %s127, %s129
      %p133 = scmp.eq.s32.totalorder %s16, 0
      %p134 = por %p132, %p133
      %p135 = scmp.ne.s32.totalorder %s127, %s129
      %p136 = scmp.eq.s32.totalorder %s21, 5
      %p137 = por %p135, %p136
      %p138 = scmp.ne.s32.totalorder %s129, %s130
      %p139 = scmp.eq.s32.totalorder %s21, 0
      %p140 = por %p138, %p139
      %p141 = scmp.ne.s32.totalorder %s129, %s130
      %p142 = scmp.eq.s32.totalorder %s22, 5
      %p143 = por %p141, %p142
      %p145 = scmp.ne.s32.totalorder %s130, %s144
      %p146 = scmp.eq.s32.totalorder %s22, 0
      %p147 = por %p145, %p146
      %s149 = sadd.s32 %s148, 1
      %p152 = scmp.eq.s32.totalorder %s16, 5
      %p153 = scmp.ne.s32.totalorder %s148, %s150
      %p154 = scmp.eq.s32.totalorder %s16, 0
      %p155 = por %p153, %p154
      %p156 = scmp.ne.s32.totalorder %s148, %s150
      %p157 = scmp.eq.s32.totalorder %s21, 5
      %p158 = por %p156, %p157
      %p159 = scmp.ne.s32.totalorder %s150, %s151
      %p160 = scmp.eq.s32.totalorder %s21, 0
      %p161 = por %p159, %p160
      %p162 = scmp.ne.s32.totalorder %s150, %s151
      %p163 = scmp.eq.s32.totalorder %s22, 5
      %p164 = por %p162, %p163
      %p166 = scmp.ne.s32.totalorder %s151, %s165
      %p167 = scmp.eq.s32.totalorder %s22, 0
      %p168 = por %p166, %p167
      %s170 = sadd.s32 %s169, 1
      %p173 = scmp.eq.s32.totalorder %s16, 5
      %p174 = scmp.ne.s32.totalorder %s169, %s171
      %p175 = scmp.eq.s32.totalorder %s16, 0
      %p176 = por %p174, %p175
      %p177 = scmp.ne.s32.totalorder %s169, %s171
      %p178 = scmp.eq.s32.totalorder %s21, 5
      %p179 = por %p177, %p178
      %p180 = scmp.ne.s32.totalorder %s171, %s172
      %p181 = scmp.eq.s32.totalorder %s21, 0
      %p182 = por %p180, %p181
      %p183 = scmp.ne.s32.totalorder %s171, %s172
      %p184 = scmp.eq.s32.totalorder %s22, 5
      %p185 = por %p183, %p184
      %p187 = scmp.ne.s32.totalorder %s172, %s186
      %p188 = scmp.eq.s32.totalorder %s22, 0
      %p189 = por %p187, %p188
      %s190 = ssub.s32 %s23, %s35
      %p191 = scmp.eq.s32.totalorder %s190, 0
      %s193 = sadd.s32 %s192, 1
      %s194 = scalar_select %p191, %s192, %s193
      %p197 = pneg %p191
      %p198 = scmp.eq.s32.totalorder %s16, 5
      %p199 = por %p197, %p198
      %p200 = scmp.ne.s32.totalorder %s192, %s195
      %p201 = scmp.eq.s32.totalorder %s16, 0
      %p202 = por %p200, %p201
      %p203 = scmp.ne.s32.totalorder %s192, %s195
      %p204 = scmp.eq.s32.totalorder %s21, 5
      %p205 = por %p203, %p204
      %p206 = scmp.ne.s32.totalorder %s195, %s196
      %p207 = scmp.eq.s32.totalorder %s21, 0
      %p208 = por %p206, %p207
      %p209 = scmp.ne.s32.totalorder %s195, %s196
      %p210 = scmp.eq.s32.totalorder %s22, 5
      %p211 = por %p209, %p210
      %p213 = scmp.ne.s32.totalorder %s196, %s212
      %p214 = scmp.eq.s32.totalorder %s22, 0
      %p215 = por %p213, %p214
      %p216 = scmp.le.s32.totalorder 1, %s16
      %p217 = scmp.lt.s32.totalorder %s16, 7
      %p218 = pnand %p216, %p217
      %p219 = pneg %p218
      // Predicated region
      $region9: #{tpu_custom_call.1} parent=5 // pred_check
        _
      $region10: #{tpu_custom_call.1} parent=5 // pred_check_branch
        %221 = sbr.rel (%p218) target = $region12
      $region11: #{tpu_custom_call.1} parent=5 // pred_region
        %s222 = ssub.s32 %s16, 1
        // Predicated region
        $region13: #{tpu_custom_call.1} parent=11 // pred_check
          %p223 = pneg %p77
        $region14: #{tpu_custom_call.1} parent=11 // pred_check_branch
          %225 = sbr.rel (%p223) target = $region16
        $region15: #{tpu_custom_call.1} parent=11 // pred_region
          _
        $region16: #{tpu_custom_call.1} parent=11 // pred_fallthru
          _
        // Predicated region
        $region17: #{tpu_custom_call.1} parent=11 // pred_check
          %p226 = pneg %p98
        $region18: #{tpu_custom_call.1} parent=11 // pred_check_branch
          %228 = sbr.rel (%p226) target = $region20
        $region19: #{tpu_custom_call.1} parent=11 // pred_region
          _
        $region20: #{tpu_custom_call.1} parent=11 // pred_fallthru
          _
        // Predicated region
        $region21: #{tpu_custom_call.1} parent=11 // pred_check
          %p229 = pneg %p119
        $region22: #{tpu_custom_call.1} parent=11 // pred_check_branch
          %231 = sbr.rel (%p229) target = $region24
        $region23: #{tpu_custom_call.1} parent=11 // pred_region
          _
        $region24: #{tpu_custom_call.1} parent=11 // pred_fallthru
          _
        // Predicated region
        $region25: #{tpu_custom_call.1} parent=11 // pred_check
          %p232 = pneg %p140
        $region26: #{tpu_custom_call.1} parent=11 // pred_check_branch
          %234 = sbr.rel (%p232) target = $region28
        $region27: #{tpu_custom_call.1} parent=11 // pred_region
          _
        $region28: #{tpu_custom_call.1} parent=11 // pred_fallthru
          _
        // Predicated region
        $region29: #{tpu_custom_call.1} parent=11 // pred_check
          %p235 = pneg %p161
        $region30: #{tpu_custom_call.1} parent=11 // pred_check_branch
          %237 = sbr.rel (%p235) target = $region32
        $region31: #{tpu_custom_call.1} parent=11 // pred_region
          _
        $region32: #{tpu_custom_call.1} parent=11 // pred_fallthru
          _
        // Predicated region
        $region33: #{tpu_custom_call.1} parent=11 // pred_check
          %p238 = pneg %p182
        $region34: #{tpu_custom_call.1} parent=11 // pred_check_branch
          %240 = sbr.rel (%p238) target = $region36
        $region35: #{tpu_custom_call.1} parent=11 // pred_region
          _
        $region36: #{tpu_custom_call.1} parent=11 // pred_fallthru
          _
      $region12: #{tpu_custom_call.1} parent=5 // pred_fallthru
        _
      %p241 = scmp.lt.s32.totalorder %s16, 6
      // Predicated region
      $region37: #{tpu_custom_call.1} parent=5 // pred_check
        %p242 = pneg %p241
      $region38: #{tpu_custom_call.1} parent=5 // pred_check_branch
        %244 = sbr.rel (%p242) target = $region40
      $region39: #{tpu_custom_call.1} parent=5 // pred_region
        // Predicated region
        $region41: #{tpu_custom_call.1} parent=39 // pred_check
          %p245 = pneg %p50
        $region42: #{tpu_custom_call.1} parent=39 // pred_check_branch
          %247 = sbr.rel (%p245) target = $region44
        $region43: #{tpu_custom_call.1} parent=39 // pred_region
          %s248 = sand.u32 %s40, 1
          %s249 = scalar_lea.sflag [#allocation5], %s248
          %s250 = sand.u32 %s40, 1
          %s251 = smul.addr %s250, 32
          %s252 = scalar_lea.vmem [#allocation4], %s251
          %s254 = ssub.s32 512, 512
          %255 = vsyncadd %s249, %s254
          %s256 = smul.addr %s23, 12
          %s257 = sadd.s32 %s24, %s256
          %s258 = smul.addr %s257, 128
          %s259 = scalar_lea.hbm %s0, %s258
          %s260 = sshll.u32 %s252, 4
          %s261 = int_to_ptr.vmem [resolvable:$true] %s260
          %266 = dma.hbm_to_vmem [thread:$0]  %s259, 512, %s261, %s249, 384, 128, 8
        $region44: #{tpu_custom_call.1} parent=39 // pred_fallthru
          _
      $region40: #{tpu_custom_call.1} parent=5 // pred_fallthru
        _
      %p267 = scmp.le.s32.totalorder 1, %s16
      %p268 = scmp.lt.s32.totalorder %s16, 7
      %p269 = pnand %p267, %p268
      %p270 = pneg %p269
      // Predicated region
      $region45: #{tpu_custom_call.1} parent=5 // pred_check
        _
      $region46: #{tpu_custom_call.1} parent=5 // pred_check_branch
        %272 = sbr.rel (%p269) target = $region48
      $region47: #{tpu_custom_call.1} parent=5 // pred_region
        %s273 = ssub.s32 %s16, 1
        %s274 = sand.u32 %s43, 1
        %s275 = scalar_lea.sflag [#allocation5], %s274
        %s276 = sand.u32 %s43, 1
        %s277 = smul.addr %s276, 32
        %s278 = scalar_lea.vmem [#allocation4], %s277
        // Predicated region
        $region49: #{tpu_custom_call.1} parent=47 // pred_check
          %p279 = pneg %p56
        $region50: #{tpu_custom_call.1} parent=47 // pred_check_branch
          %281 = sbr.rel (%p279) target = $region52
        $region51: #{tpu_custom_call.1} parent=47 // pred_region
          %282 = dma.done %s275, 512
        $region52: #{tpu_custom_call.1} parent=47 // pred_fallthru
          _
        %s283 = sand.u32 %s43, 1
        %s284 = scalar_lea.sflag [#allocation5], %s283
        %s285 = sand.u32 %s43, 1
        %s286 = smul.addr %s285, 32
        %s287 = scalar_lea.vmem [#allocation4], %s286
        %p288 = pneg %p56
        %p289 = pneg %p53
        %p290 = pneg %p77
        %p291 = pneg %p74
        %p292 = pneg %p98
        %p293 = pneg %p95
        %p294 = pneg %p119
        %p295 = pneg %p116
        %p296 = pneg %p140
        %p297 = pneg %p137
        %p298 = pneg %p161
        %p299 = pneg %p158
        %p300 = pneg %p182
        %p301 = pneg %p179
        %p302 = pneg %p208
        %p303 = pneg %p205
        %p304 = scmp.lt.s32.totalorder %s25, 1
        %s305 = scalar_select %p304, %s25, 1
        %s306 = smul.addr %s305, 2
        %s307 = smul.addr %s306, 8
        %s308 = scalar_lea.vmem %s7, %s307
        %p309 = scmp.lt.s32.totalorder %s25, 1
        %s310 = scalar_select %p309, %s25, 1
        %s311 = smul.addr %s310, 2
        %s312 = smul.addr %s311, 8
        %s313 = scalar_lea.vmem %s7, %s312
        %p314 = scmp.eq.s32.totalorder %s26, 0
        // Predicated region
        $region53: #{tpu_custom_call.1} parent=47 // pred_check
          %p315 = pneg %p314
        $region54: #{tpu_custom_call.1} parent=47 // pred_check_branch
          %317 = sbr.rel (%p315) target = $region56
        $region55: #{tpu_custom_call.1} parent=47 // pred_region
          %vm318 = vcmask 7168
          %319 = vst.msk [vmem:[#allocation2] sm:$0xff] %vm318, 0.0
          %320 = vst.msk [vmem:[#allocation2 + $0x8] sm:$0xff] %vm318, 0.0
          %321 = vst.msk [vmem:[#allocation3] sm:$0xff] %vm318, 0.0
          %322 = vst.msk [vmem:[#allocation3 + $0x8] sm:$0xff] %vm318, 0.0
        $region56: #{tpu_custom_call.1} parent=47 // pred_fallthru
          _
        %v323 = vld [vmem:[%s278] sm:$0xff]
        %v324 = vld [vmem:[%s278 + $0x8] sm:$0xff]
        %v325 = vld [vmem:[%s278 + $0x10] sm:$0xff]
        %v326 = vld [vmem:[%s278 + $0x18] sm:$0xff]
        %v327 = vld [vmem:[%s1] sm:$0xff]
        %v328 = vld [vmem:[%s1 + $0x8] sm:$0xff]
        %v329 = vld [vmem:[%s1 + $0x10] sm:$0xff]
        %v330 = vld [vmem:[%s1 + $0x18] sm:$0xff]
        %v331 = vld [vmem:[%s2] sm:$0xff]
        %v332 = vld [vmem:[%s2 + $0x8] sm:$0xff]
        %v333 = vld [vmem:[%s2 + $0x10] sm:$0xff]
        %v334 = vld [vmem:[%s2 + $0x18] sm:$0xff]
        %336 = vset.pattern.permute.xlu0 0
        %337 = vperm.xlu0 %336, %v331
        %v338 = vpop.permute.xlu0 %337
        %341 = vset.pattern.permute.xlu0 0
        %342 = vperm.xlu0 %341, %v332
        %v343 = vpop.permute.xlu0 %342
        %346 = vset.pattern.permute.xlu0 0
        %347 = vperm.xlu0 %346, %v333
        %v348 = vpop.permute.xlu0 %347
        %351 = vset.pattern.permute.xlu0 0
        %352 = vperm.xlu0 %351, %v334
        %v353 = vpop.permute.xlu0 %352
        %vm355 = vcmask 261120
        %v357 = vsel %vm355, %v327, 0
        %v360 = vsel %vm355, %v328, 0
        %v363 = vsel %vm355, %v329, 0
        %v366 = vsel %vm355, %v330, 0
        %368 = vmatprep.subr.mxu0 0.0
        %369 = vmatpush1.msra.mxu0 %v323
        %370 = vmatprep.subr.mxu0 0.0
        %371 = vmatpush1.msra.mxu0 %v324
        %372 = vmatprep.subr.mxu0 0.0
        %373 = vmatpush1.msra.mxu0 %v325
        %374 = vmatprep.subr.mxu0 0.0
        %375 = vmatpush1.msra.mxu0 %v326
        %376 = vmatprep.subr.mxu0 0.0
        %377 = vmatpush1.msra.mxu0 0.0
        %378 = vmatprep.subr.mxu0 0.0
        %379 = vmatpush1.msra.mxu0 0.0
        %380 = vmatprep.subr.mxu0 0.0
        %381 = vmatpush1.msra.mxu0 0.0
        %382 = vmatprep.subr.mxu0 0.0
        %383 = vmatpush1.msra.mxu0 0.0
        %384 = vmatprep.subr.mxu0 0.0
        %385 = vmatpush1.msra.mxu0 0.0
        %386 = vmatprep.subr.mxu0 0.0
        %387 = vmatpush1.msra.mxu0 0.0
        %388 = vmatprep.subr.mxu0 0.0
        %389 = vmatpush1.msra.mxu0 0.0
        %390 = vmatprep.subr.mxu0 0.0
        %391 = vmatpush1.msra.mxu0 0.0
        %392 = vmatprep.subr.mxu0 0.0
        %393 = vmatpush1.msra.mxu0 0.0
        %394 = vmatprep.subr.mxu0 0.0
        %395 = vmatpush1.msra.mxu0 0.0
        %396 = vmatprep.subr.mxu0 0.0
        %397 = vmatpush1.msra.mxu0 0.0
        %398 = vmatprep.subr.mxu0 0.0
        %399 = vmatpush1.msra.mxu0 0.0
        %400 = vmatprep.subr.mxu0 0.0
        %401 = vmatpush1.msra.mxu0 0.0
        %402 = vmatprep.subr.mxu0 0.0
        %403 = vmatpush1.msra.mxu0 0.0
        %404 = vmatprep.subr.mxu0 0.0
        %405 = vmatpush1.msra.mxu0 0.0
        %406 = vmatprep.subr.mxu0 0.0
        %407 = vmatpush1.msra.mxu0 0.0
        %408 = vmatprep.subr.mxu0 0.0
        %409 = vmatpush1.msra.mxu0 0.0
        %410 = vmatprep.subr.mxu0 0.0
        %411 = vmatpush1.msra.mxu0 0.0
        %412 = vmatprep.subr.mxu0 0.0
        %413 = vmatpush1.msra.mxu0 0.0
        %414 = vmatprep.subr.mxu0 0.0
        %415 = vmatpush1.msra.mxu0 0.0
        %416 = vmatprep.subr.mxu0 0.0
        %417 = vmatpush1.msra.mxu0 0.0
        %418 = vmatprep.subr.mxu0 0.0
        %419 = vmatpush1.msra.mxu0 0.0
        %420 = vmatprep.subr.mxu0 0.0
        %421 = vmatpush1.msra.mxu0 0.0
        %422 = vmatprep.subr.mxu0 0.0
        %423 = vmatpush1.msra.mxu0 0.0
        %424 = vmatprep.subr.mxu0 0.0
        %425 = vmatpush1.msra.mxu0 0.0
        %426 = vmatprep.subr.mxu0 0.0
        %427 = vmatpush1.msra.mxu0 0.0
        %428 = vmatprep.subr.mxu0 0.0
        %429 = vmatpush1.msra.mxu0 0.0
        %430 = vmatprep.subr.mxu0 0.0
        %431 = vmatpush1.msra.mxu0 0.0
        %432 = vmatprep.mubr.f32.mxu0 0.0
        %433 = vmatmul.mubr.f32.gmra.mrb[0].mxu0 %v357
        %v434 = vpop.f32.mrb[0].mxu0
        %v435 = vadd.f32 %v338, %v434
        %v436 = vpop.f32.mrb[0].mxu0
        %437 = vmatprep.mubr.f32.mxu0 0.0
        %438 = vmatmul.mubr.f32.gmra.mrb[0].mxu0 %v360
        %v439 = vpop.f32.mrb[0].mxu0
        %v440 = vadd.f32 %v343, %v439
        %v441 = vpop.f32.mrb[0].mxu0
        %442 = vmatprep.mubr.f32.mxu0 0.0
        %443 = vmatmul.mubr.f32.gmra.mrb[0].mxu0 %v363
        %v444 = vpop.f32.mrb[0].mxu0
        %v445 = vadd.f32 %v348, %v444
        %v446 = vpop.f32.mrb[0].mxu0
        %447 = vmatprep.mubr.f32.mxu0 0.0
        %448 = vmatmul.mubr.f32.gmra.mrb[0].mxu0 %v366
        %v449 = vpop.f32.mrb[0].mxu0
        %v450 = vadd.f32 %v353, %v449
        %v451 = vpop.f32.mrb[0].mxu0
        %452 = vdwg.mxu0
        %v453 = vmax.f32 %v435, 0.0
        %v454 = vmax.f32 %v440, 0.0
        %v455 = vmax.f32 %v445, 0.0
        %v456 = vmax.f32 %v450, 0.0
        %v457 = vld [vmem:[%s3] sm:$0xff]
        %v458 = vld [vmem:[%s3 + $0x8] sm:$0xff]
        %v459 = vld [vmem:[%s3 + $0x10] sm:$0xff]
        %v460 = vld [vmem:[%s3 + $0x18] sm:$0xff]
        %v461 = vld [vmem:[%s4] sm:$0xff]
        %v462 = vld [vmem:[%s4 + $0x8] sm:$0xff]
        %v463 = vld [vmem:[%s4 + $0x10] sm:$0xff]
        %v464 = vld [vmem:[%s4 + $0x18] sm:$0xff]
        %466 = vset.pattern.permute.xlu0 0
        %467 = vperm.xlu0 %466, %v461
        %v468 = vpop.permute.xlu0 %467
        %471 = vset.pattern.permute.xlu0 0
        %472 = vperm.xlu0 %471, %v462
        %v473 = vpop.permute.xlu0 %472
        %476 = vset.pattern.permute.xlu0 0
        %477 = vperm.xlu0 %476, %v463
        %v478 = vpop.permute.xlu0 %477
        %481 = vset.pattern.permute.xlu0 0
        %482 = vperm.xlu0 %481, %v464
        %v483 = vpop.permute.xlu0 %482
        %v486 = vsel %vm355, %v457, 0
        %v489 = vsel %vm355, %v458, 0
        %v492 = vsel %vm355, %v459, 0
        %v495 = vsel %vm355, %v460, 0
        %497 = vmatprep.subr.mxu0 0.0
        %498 = vmatpush1.msra.mxu0 %v453
        %499 = vmatprep.subr.mxu0 0.0
        %500 = vmatpush1.msra.mxu0 %v454
        %501 = vmatprep.subr.mxu0 0.0
        %502 = vmatpush1.msra.mxu0 %v455
        %503 = vmatprep.subr.mxu0 0.0
        %504 = vmatpush1.msra.mxu0 %v456
        %505 = vmatprep.subr.mxu0 0.0
        %506 = vmatpush1.msra.mxu0 0.0
        %507 = vmatprep.subr.mxu0 0.0
        %508 = vmatpush1.msra.mxu0 0.0
        %509 = vmatprep.subr.mxu0 0.0
        %510 = vmatpush1.msra.mxu0 0.0
        %511 = vmatprep.subr.mxu0 0.0
        %512 = vmatpush1.msra.mxu0 0.0
        %513 = vmatprep.subr.mxu0 0.0
        %514 = vmatpush1.msra.mxu0 0.0
        %515 = vmatprep.subr.mxu0 0.0
        %516 = vmatpush1.msra.mxu0 0.0
        %517 = vmatprep.subr.mxu0 0.0
        %518 = vmatpush1.msra.mxu0 0.0
        %519 = vmatprep.subr.mxu0 0.0
        %520 = vmatpush1.msra.mxu0 0.0
        %521 = vmatprep.subr.mxu0 0.0
        %522 = vmatpush1.msra.mxu0 0.0
        %523 = vmatprep.subr.mxu0 0.0
        %524 = vmatpush1.msra.mxu0 0.0
        %525 = vmatprep.subr.mxu0 0.0
        %526 = vmatpush1.msra.mxu0 0.0
        %527 = vmatprep.subr.mxu0 0.0
        %528 = vmatpush1.msra.mxu0 0.0
        %529 = vmatprep.subr.mxu0 0.0
        %530 = vmatpush1.msra.mxu0 0.0
        %531 = vmatprep.subr.mxu0 0.0
        %532 = vmatpush1.msra.mxu0 0.0
        %533 = vmatprep.subr.mxu0 0.0
        %534 = vmatpush1.msra.mxu0 0.0
        %535 = vmatprep.subr.mxu0 0.0
        %536 = vmatpush1.msra.mxu0 0.0
        %537 = vmatprep.subr.mxu0 0.0
        %538 = vmatpush1.msra.mxu0 0.0
        %539 = vmatprep.subr.mxu0 0.0
        %540 = vmatpush1.msra.mxu0 0.0
        %541 = vmatprep.subr.mxu0 0.0
        %542 = vmatpush1.msra.mxu0 0.0
        %543 = vmatprep.subr.mxu0 0.0
        %544 = vmatpush1.msra.mxu0 0.0
        %545 = vmatprep.subr.mxu0 0.0
        %546 = vmatpush1.msra.mxu0 0.0
        %547 = vmatprep.subr.mxu0 0.0
        %548 = vmatpush1.msra.mxu0 0.0
        %549 = vmatprep.subr.mxu0 0.0
        %550 = vmatpush1.msra.mxu0 0.0
        %551 = vmatprep.subr.mxu0 0.0
        %552 = vmatpush1.msra.mxu0 0.0
        %553 = vmatprep.subr.mxu0 0.0
        %554 = vmatpush1.msra.mxu0 0.0
        %555 = vmatprep.subr.mxu0 0.0
        %556 = vmatpush1.msra.mxu0 0.0
        %557 = vmatprep.subr.mxu0 0.0
        %558 = vmatpush1.msra.mxu0 0.0
        %559 = vmatprep.subr.mxu0 0.0
        %560 = vmatpush1.msra.mxu0 0.0
        %561 = vmatprep.mubr.f32.mxu0 0.0
        %562 = vmatmul.mubr.f32.gmra.mrb[0].mxu0 %v486
        %v563 = vpop.f32.mrb[0].mxu0
        %v564 = vadd.f32 %v468, %v563
        %v565 = vpop.f32.mrb[0].mxu0
        %566 = vmatprep.mubr.f32.mxu0 0.0
        %567 = vmatmul.mubr.f32.gmra.mrb[0].mxu0 %v489
        %v568 = vpop.f32.mrb[0].mxu0
        %v569 = vadd.f32 %v473, %v568
        %v570 = vpop.f32.mrb[0].mxu0
        %571 = vmatprep.mubr.f32.mxu0 0.0
        %572 = vmatmul.mubr.f32.gmra.mrb[0].mxu0 %v492
        %v573 = vpop.f32.mrb[0].mxu0
        %v574 = vadd.f32 %v478, %v573
        %v575 = vpop.f32.mrb[0].mxu0
        %576 = vmatprep.mubr.f32.mxu0 0.0
        %577 = vmatmul.mubr.f32.gmra.mrb[0].mxu0 %v495
        %v578 = vpop.f32.mrb[0].mxu0
        %v579 = vadd.f32 %v483, %v578
        %v580 = vpop.f32.mrb[0].mxu0
        %581 = vdwg.mxu0
        %v582 = vmax.f32 %v564, 0.0
        %v583 = vmax.f32 %v569, 0.0
        %v584 = vmax.f32 %v574, 0.0
        %v585 = vmax.f32 %v579, 0.0
        %v586 = vadd.f32 %v582, %v323
        %v587 = vadd.f32 %v583, %v324
        %v588 = vadd.f32 %v584, %v325
        %v589 = vadd.f32 %v585, %v326
        %v590 = vld [vmem:[%s5] sm:$0xff]
        %v591 = vld [vmem:[%s5 + $0x8] sm:$0xff]
        %v592 = vld [vmem:[%s5 + $0x10] sm:$0xff]
        %v593 = vld [vmem:[%s5 + $0x18] sm:$0xff]
        %v594 = vld [vmem:[%s6] sm:$0xff]
        %v595 = vld [vmem:[%s6 + $0x8] sm:$0xff]
        %v596 = vld [vmem:[%s6 + $0x10] sm:$0xff]
        %v597 = vld [vmem:[%s6 + $0x18] sm:$0xff]
        %599 = vset.pattern.permute.xlu0 0
        %600 = vperm.xlu0 %599, %v594
        %v601 = vpop.permute.xlu0 %600
        %604 = vset.pattern.permute.xlu0 0
        %605 = vperm.xlu0 %604, %v595
        %v606 = vpop.permute.xlu0 %605
        %609 = vset.pattern.permute.xlu0 0
        %610 = vperm.xlu0 %609, %v596
        %v611 = vpop.permute.xlu0 %610
        %614 = vset.pattern.permute.xlu0 0
        %615 = vperm.xlu0 %614, %v597
        %v616 = vpop.permute.xlu0 %615
        %v619 = vsel %vm355, %v590, 0
        %v622 = vsel %vm355, %v591, 0
        %v625 = vsel %vm355, %v592, 0
        %v628 = vsel %vm355, %v593, 0
        %630 = vmatprep.subr.mxu0 0.0
        %631 = vmatpush1.msra.mxu0 %v586
        %632 = vmatprep.subr.mxu0 0.0
        %633 = vmatpush1.msra.mxu0 %v587
        %634 = vmatprep.subr.mxu0 0.0
        %635 = vmatpush1.msra.mxu0 %v588
        %636 = vmatprep.subr.mxu0 0.0
        %637 = vmatpush1.msra.mxu0 %v589
        %638 = vmatprep.subr.mxu0 0.0
        %639 = vmatpush1.msra.mxu0 0.0
        %640 = vmatprep.subr.mxu0 0.0
        %641 = vmatpush1.msra.mxu0 0.0
        %642 = vmatprep.subr.mxu0 0.0
        %643 = vmatpush1.msra.mxu0 0.0
        %644 = vmatprep.subr.mxu0 0.0
        %645 = vmatpush1.msra.mxu0 0.0
        %646 = vmatprep.subr.mxu0 0.0
        %647 = vmatpush1.msra.mxu0 0.0
        %648 = vmatprep.subr.mxu0 0.0
        %649 = vmatpush1.msra.mxu0 0.0
        %650 = vmatprep.subr.mxu0 0.0
        %651 = vmatpush1.msra.mxu0 0.0
        %652 = vmatprep.subr.mxu0 0.0
        %653 = vmatpush1.msra.mxu0 0.0
        %654 = vmatprep.subr.mxu0 0.0
        %655 = vmatpush1.msra.mxu0 0.0
        %656 = vmatprep.subr.mxu0 0.0
        %657 = vmatpush1.msra.mxu0 0.0
        %658 = vmatprep.subr.mxu0 0.0
        %659 = vmatpush1.msra.mxu0 0.0
        %660 = vmatprep.subr.mxu0 0.0
        %661 = vmatpush1.msra.mxu0 0.0
        %662 = vmatprep.subr.mxu0 0.0
        %663 = vmatpush1.msra.mxu0 0.0
        %664 = vmatprep.subr.mxu0 0.0
        %665 = vmatpush1.msra.mxu0 0.0
        %666 = vmatprep.subr.mxu0 0.0
        %667 = vmatpush1.msra.mxu0 0.0
        %668 = vmatprep.subr.mxu0 0.0
        %669 = vmatpush1.msra.mxu0 0.0
        %670 = vmatprep.subr.mxu0 0.0
        %671 = vmatpush1.msra.mxu0 0.0
        %672 = vmatprep.subr.mxu0 0.0
        %673 = vmatpush1.msra.mxu0 0.0
        %674 = vmatprep.subr.mxu0 0.0
        %675 = vmatpush1.msra.mxu0 0.0
        %676 = vmatprep.subr.mxu0 0.0
        %677 = vmatpush1.msra.mxu0 0.0
        %678 = vmatprep.subr.mxu0 0.0
        %679 = vmatpush1.msra.mxu0 0.0
        %680 = vmatprep.subr.mxu0 0.0
        %681 = vmatpush1.msra.mxu0 0.0
        %682 = vmatprep.subr.mxu0 0.0
        %683 = vmatpush1.msra.mxu0 0.0
        %684 = vmatprep.subr.mxu0 0.0
        %685 = vmatpush1.msra.mxu0 0.0
        %686 = vmatprep.subr.mxu0 0.0
        %687 = vmatpush1.msra.mxu0 0.0
        %688 = vmatprep.subr.mxu0 0.0
        %689 = vmatpush1.msra.mxu0 0.0
        %690 = vmatprep.subr.mxu0 0.0
        %691 = vmatpush1.msra.mxu0 0.0
        %692 = vmatprep.subr.mxu0 0.0
        %693 = vmatpush1.msra.mxu0 0.0
        %694 = vmatprep.mubr.f32.mxu0 0.0
        %695 = vmatmul.mubr.f32.gmra.mrb[0].mxu0 %v619
        %v696 = vpop.f32.mrb[0].mxu0
        %v697 = vadd.f32 %v601, %v696
        %v698 = vpop.f32.mrb[0].mxu0
        %699 = vmatprep.mubr.f32.mxu0 0.0
        %700 = vmatmul.mubr.f32.gmra.mrb[0].mxu0 %v622
        %v701 = vpop.f32.mrb[0].mxu0
        %v702 = vadd.f32 %v606, %v701
        %v703 = vpop.f32.mrb[0].mxu0
        %704 = vmatprep.mubr.f32.mxu0 0.0
        %705 = vmatmul.mubr.f32.gmra.mrb[0].mxu0 %v625
        %v706 = vpop.f32.mrb[0].mxu0
        %v707 = vadd.f32 %v611, %v706
        %v708 = vpop.f32.mrb[0].mxu0
        %709 = vmatprep.mubr.f32.mxu0 0.0
        %710 = vmatmul.mubr.f32.gmra.mrb[0].mxu0 %v628
        %v711 = vpop.f32.mrb[0].mxu0
        %v712 = vadd.f32 %v616, %v711
        %v713 = vpop.f32.mrb[0].mxu0
        %714 = vdwg.mxu0
        %v715 = vxor.u32 %v697, 2147483648
        %v716 = vxor.u32 %v702, 2147483648
        %v717 = vxor.u32 %v707, 2147483648
        %v718 = vxor.u32 %v712, 2147483648
        %v719 = vmul.f32 %v715, 1.442695
        %v720 = vpow.pop %v719
        %v721 = vmul.f32 %v716, 1.442695
        %v722 = vpow.pop %v721
        %v723 = vmul.f32 %v717, 1.442695
        %v724 = vpow.pop %v723
        %v725 = vmul.f32 %v718, 1.442695
        %v726 = vpow.pop %v725
        %v727 = vadd.f32 %v720, 1.0
        %v728 = vadd.f32 %v722, 1.0
        %v729 = vadd.f32 %v724, 1.0
        %v730 = vadd.f32 %v726, 1.0
        %v731 = vrcp.pop %v727
        %v732 = vmul.f32 1.0, %v731
        %v733 = vrcp.pop %v728
        %v734 = vmul.f32 1.0, %v733
        %v735 = vrcp.pop %v729
        %v736 = vmul.f32 1.0, %v735
        %v737 = vrcp.pop %v730
        %v738 = vmul.f32 1.0, %v737
        %v739 = vmax.f32 %v732, 1e-07
        %v740 = vmax.f32 %v734, 1e-07
        %v741 = vmin.f32 %v739, 0.9999999
        %v742 = vmin.f32 %v740, 0.9999999
        %v743 = vmul.f32 %v741, %v736
        %v744 = vmul.f32 %v742, %v738
        %p745 = scmp.eq.s32.totalorder %s26, 2
        %p746 = scmp.ne.s32.totalorder %s26, 2
        // Predicated region
        $region57: #{tpu_custom_call.1} parent=47 // pred_check
          %p747 = pneg %p746
        $region58: #{tpu_custom_call.1} parent=47 // pred_check_branch
          %749 = sbr.rel (%p747) target = $region60
        $region59: #{tpu_custom_call.1} parent=47 // pred_region
          %v750 = vld [vmem:[#allocation2] sm:$0xff]
          %v751 = vld [vmem:[#allocation2 + $0x8] sm:$0xff]
          %752 = vadd.xlane.f32.xlu0 %v743
          %v753 = vpop.xlane.xlu0 %752
          %754 = vadd.xlane.f32.xlu0 %v744
          %v755 = vpop.xlane.xlu0 %754
          %v756 = vadd.f32 %v750, %v753
          %v757 = vadd.f32 %v751, %v755
          %vm758 = vcmask 7168
          %759 = vst.msk [vmem:[#allocation2] sm:$0xff] %vm758, %v756
          %760 = vst.msk [vmem:[#allocation2 + $0x8] sm:$0xff] %vm758, %v757
          %v761 = vld [vmem:[#allocation3] sm:$0xff]
          %v762 = vld [vmem:[#allocation3 + $0x8] sm:$0xff]
          %763 = vadd.xlane.f32.xlu0 %v741
          %v764 = vpop.xlane.xlu0 %763
          %765 = vadd.xlane.f32.xlu0 %v742
          %v766 = vpop.xlane.xlu0 %765
          %v767 = vadd.f32 %v761, %v764
          %v768 = vadd.f32 %v762, %v766
          %769 = vst.msk [vmem:[#allocation3] sm:$0xff] %vm758, %v767
          %770 = vst.msk [vmem:[#allocation3 + $0x8] sm:$0xff] %vm758, %v768
        $region60: #{tpu_custom_call.1} parent=47 // pred_fallthru
          _
        // Predicated region
        $region61: #{tpu_custom_call.1} parent=47 // pred_check
          %p771 = pneg %p745
        $region62: #{tpu_custom_call.1} parent=47 // pred_check_branch
          %773 = sbr.rel (%p771) target = $region64
        $region63: #{tpu_custom_call.1} parent=47 // pred_region
          %v774 = vlaneseq
          %v775 = vand.u32 %v774, 127
          %s776 = smul.u32 %s26, 128
          %v777 = vstv %s776
          %v778 = vadd.s32 %v777, %v775
          %vm779 = vcmp.lt.s32.totalorder %v778, 300
          %v780 = vld [vmem:[#allocation2] sm:$0xff]
          %v781 = vld [vmem:[#allocation2 + $0x8] sm:$0xff]
          %v782 = vsel %vm779, 1, 0
          %vm783 = vcmp.eq.s32.totalorder %v782, 1
          %v784 = vsel %vm783, %v743, 0.0
          %v785 = vsel %vm783, %v744, 0.0
          %786 = vadd.xlane.f32.xlu0 %v784
          %v787 = vpop.xlane.xlu0 %786
          %788 = vadd.xlane.f32.xlu0 %v785
          %v789 = vpop.xlane.xlu0 %788
          %v790 = vadd.f32 %v780, %v787
          %v791 = vadd.f32 %v781, %v789
          %vm792 = vcmask 7168
          %793 = vst.msk [vmem:[#allocation2] sm:$0xff] %vm792, %v790
          %794 = vst.msk [vmem:[#allocation2 + $0x8] sm:$0xff] %vm792, %v791
          %v795 = vld [vmem:[#allocation3] sm:$0xff]
          %v796 = vld [vmem:[#allocation3 + $0x8] sm:$0xff]
          %v797 = vsel %vm783, %v741, 0.0
          %v798 = vsel %vm783, %v742, 0.0
          %799 = vadd.xlane.f32.xlu0 %v797
          %v800 = vpop.xlane.xlu0 %799
          %801 = vadd.xlane.f32.xlu0 %v798
          %v802 = vpop.xlane.xlu0 %801
          %v803 = vadd.f32 %v795, %v800
          %v804 = vadd.f32 %v796, %v802
          %805 = vst.msk [vmem:[#allocation3] sm:$0xff] %vm792, %v803
          %806 = vst.msk [vmem:[#allocation3 + $0x8] sm:$0xff] %vm792, %v804
          %v807 = vld [vmem:[#allocation2] sm:$0xff]
          %v808 = vld [vmem:[#allocation2 + $0x8] sm:$0xff]
          %v809 = vld [vmem:[#allocation3] sm:$0xff]
          %v810 = vld [vmem:[#allocation3 + $0x8] sm:$0xff]
          %v811 = vrcp.pop %v809
          %v812 = vmul.f32 %v807, %v811
          %v813 = vrcp.pop %v810
          %v814 = vmul.f32 %v808, %v813
          %v815 = vmax.f32 %v812, 0.0
          %v816 = vmax.f32 %v814, 0.0
          %v817 = vmin.f32 %v815, 1.0
          %v818 = vmin.f32 %v816, 1.0
          %819 = vst.msk [vmem:[%s313] sm:$0xff] %vm792, %v817
          %820 = vst.msk [vmem:[%s313 + $0x8] sm:$0xff] %vm792, %v818
        $region64: #{tpu_custom_call.1} parent=47 // pred_fallthru
          _
        %p821 = scmp.lt.s32.totalorder %s25, 1
        %s822 = scalar_select %p821, %s25, 1
        %s823 = smul.addr %s822, 2
        %s824 = smul.addr %s823, 8
        %s825 = scalar_lea.vmem %s7, %s824
        // Predicated region
        $region65: #{tpu_custom_call.1} parent=47 // pred_check
          %p826 = pneg %p205
        $region66: #{tpu_custom_call.1} parent=47 // pred_check_branch
          %828 = sbr.rel (%p826) target = $region68
        $region67: #{tpu_custom_call.1} parent=47 // pred_region
          _
        $region68: #{tpu_custom_call.1} parent=47 // pred_fallthru
          _
      $region48: #{tpu_custom_call.1} parent=5 // pred_fallthru
        _
      %p829 = scmp.le.s32.totalorder 2, %s16
      // Predicated region
      $region69: #{tpu_custom_call.1} parent=5 // pred_check
        %p830 = pneg %p829
      $region70: #{tpu_custom_call.1} parent=5 // pred_check_branch
        %832 = sbr.rel (%p830) target = $region72
      $region71: #{tpu_custom_call.1} parent=5 // pred_region
        %s833 = ssub.s32 %s16, 2
        // Predicated region
        $region73: #{tpu_custom_call.1} parent=71 // pred_check
          %p834 = pneg %p211
        $region74: #{tpu_custom_call.1} parent=71 // pred_check_branch
          %836 = sbr.rel (%p834) target = $region76
        $region75: #{tpu_custom_call.1} parent=71 // pred_region
          %p837 = scmp.lt.s32.totalorder %s27, 1
          %s838 = scalar_select %p837, %s27, 1
          %s839 = smul.addr %s838, 2
          %s840 = smul.addr %s839, 8
          %s841 = scalar_lea.vmem %s7, %s840
        $region76: #{tpu_custom_call.1} parent=71 // pred_fallthru
          _
      $region72: #{tpu_custom_call.1} parent=5 // pred_fallthru
        _
    $region6: #{tpu_custom_call.1} parent=1 // loop_footer
      %s20 = sadd.s32 1, %s16
    $region7: #{tpu_custom_call.1} parent=1 // loop_footer_branch
      %15 = sbr.rel target = $region3
    $region8: #{tpu_custom_call.1} parent=1 // loop_exit
      _
    %842 = vsyncpa [#allocation5], 1
    %s843 = scalar_lea.sflag [#allocation5], 1
    %844 = vsyncpa %s843, 1

</llo_original>
